<compile_context>
chip_gen: v7x
topology: tpu7x:2x2x1
jax: 0.10.0
libtpu: 0.0.40
codegen_flags: <defaults>
</compile_context>

<pallas_src>
import functools

import jax
import jax.numpy as jnp
from jax.experimental import pallas as pl
from jax.experimental.pallas import tpu as pltpu


def _round_up(x, m):
    return ((x + m - 1) // m) * m


# ---------------------------------------------------------------------------
# Kernels
# ---------------------------------------------------------------------------

def _mlp_kernel(x_ref, w1_ref, b1_ref, w2_ref, b2_ref, o_ref, *, compute_dtype):
    """One (batch, token-tile) block.

    x_ref : [1, D, tn]  input tokens (channels on sublanes, tokens on lanes)
    w1_ref: [H, D]      fc1 weight (bf16),  b1_ref: [H, 1] (f32)
    w2_ref: [H, H]      fc2 weight (bf16),  b2_ref: [H, 1] (f32)
    o_ref : [1, D, tn]  output tokens

    Tokens are independent (all reductions are over channels), so garbage in a
    partial edge tile stays in its own (masked-out) columns.
    """
    x = x_ref[0]                                     # [D, tn]
    x_c = x.astype(compute_dtype)

    # h = relu(W1 @ x + b1)   -- MXU matmul, f32 accumulation, f32 epilogue.
    h = jnp.dot(w1_ref[...], x_c, preferred_element_type=jnp.float32)
    h = jnp.maximum(h + b1_ref[...], 0.0)            # bias broadcasts over lanes
    # TODO(synk): Dropout(p=0.15) omitted (inference / eval-mode semantics).

    # y = W2 @ h + b2 + x     -- residual requires H == D.
    y = jnp.dot(w2_ref[...], h.astype(compute_dtype),
                preferred_element_type=jnp.float32)
    y = y + b2_ref[...] + x.astype(jnp.float32)

    o_ref[0] = y.astype(o_ref.dtype)


def _mlp_kernel_whole(x_ref, w1_ref, b1_ref, w2_ref, b2_ref, o_ref, *,
                      compute_dtype, batch):
    """Single-grid-step kernel for tiny problems: whole [B, D, T] lives in VMEM."""
    for b in range(batch):                           # static unroll, B is small here
        x = x_ref[b]                                 # [D, T]
        x_c = x.astype(compute_dtype)
        h = jnp.dot(w1_ref[...], x_c, preferred_element_type=jnp.float32)
        h = jnp.maximum(h + b1_ref[...], 0.0)
        # TODO(synk): Dropout(p=0.15) omitted (inference / eval-mode semantics).
        y = jnp.dot(w2_ref[...], h.astype(compute_dtype),
                    preferred_element_type=jnp.float32)
        o_ref[b] = (y + b2_ref[...] + x.astype(jnp.float32)).astype(o_ref.dtype)


# ---------------------------------------------------------------------------
# Tiling heuristics
# ---------------------------------------------------------------------------

def _pick_tn(D, T, B):
    """Token-tile width: ~2 MiB f32 x-tiles, VMEM-budgeted, megacore-aware."""
    t_ceil = _round_up(max(T, 1), 128)

    # Aim for ~2 MiB of f32 activations per x tile (mem-bound sweet spot).
    tn = _round_up(max((2 << 20) // (4 * D), 128), 128)
    tn = max(512, min(tn, 8192))

    # Cap so double-buffered x/out tiles + f32/bf16 intermediates + resident
    # (double-buffered) bf16 weights stay under ~24 MiB of scoped VMEM.
    w_bytes = 2 * 2 * 2 * D * D                      # W1 + W2, bf16, 2 buffers
    cap = max(128, ((((24 << 20) - w_bytes) // (28 * D)) // 128) * 128)
    tn = min(tn, cap, t_ceil)

    # v7x megacore: with B == 1 guarantee >= 2 parallel token steps (keep >=512).
    if B == 1 and t_ceil >= 1024:
        tn = min(tn, max(512, _round_up(t_ceil // 2, 128)))

    return max(tn, 128)


# ---------------------------------------------------------------------------
# Wrappers
# ---------------------------------------------------------------------------

def mlp_channel_major(x_bdt, w1, b1, w2, b2, *, compute_dtype=jnp.bfloat16,
                      small_bytes_threshold=2 << 20):
    """x_bdt: [B, D, T] channel-major tokens.  w1: [H, D], w2: [H, H], H == D."""
    B, D, T = x_bdt.shape
    H = w1.shape[0]
    assert H == D, "residual link requires hidden_dim == input_dim"

    w1_c = w1.astype(compute_dtype)
    w2_c = w2.astype(compute_dtype)
    b1_2d = b1.reshape(H, 1).astype(jnp.float32)
    b2_2d = b2.reshape(H, 1).astype(jnp.float32)

    cparams = pltpu.CompilerParams(
        dimension_semantics=("parallel", "parallel"),
        vmem_limit_bytes=32 << 20)

    x_bytes = B * D * T * x_bdt.dtype.itemsize

    # --- Tiny-problem path: single grid step, whole tensor resident in VMEM. ---
    if x_bytes <= small_bytes_threshold and B <= 8:
        kernel = functools.partial(_mlp_kernel_whole,
                                   compute_dtype=compute_dtype, batch=B)
        return pl.pallas_call(
            kernel,
            out_shape=jax.ShapeDtypeStruct((B, D, T), x_bdt.dtype),
            grid_spec=pltpu.PrefetchScalarGridSpec(
                num_scalar_prefetch=0,
                grid=(1,),
                in_specs=[
                    pl.BlockSpec((B, D, T), lambda i: (0, 0, 0)),   # x (whole)
                    pl.BlockSpec((H, D), lambda i: (0, 0)),         # W1
                    pl.BlockSpec((H, 1), lambda i: (0, 0)),         # b1
                    pl.BlockSpec((H, H), lambda i: (0, 0)),         # W2
                    pl.BlockSpec((H, 1), lambda i: (0, 0)),         # b2
                ],
                out_specs=pl.BlockSpec((B, D, T), lambda i: (0, 0, 0)),
            ),
            compiler_params=pltpu.CompilerParams(
                dimension_semantics=("arbitrary",),
                vmem_limit_bytes=32 << 20),
        )(x_bdt, w1_c, b1_2d, w2_c, b2_2d)

    # --- General path: grid over (batch, token tiles); partial edge tile is
    #     handled by Pallas masked edge loads/stores (no wrapper pad/slice). ---
    tn = _pick_tn(D, T, B)
    grid = (B, pl.cdiv(T, tn))
    kernel = functools.partial(_mlp_kernel, compute_dtype=compute_dtype)

    return pl.pallas_call(
        kernel,
        out_shape=jax.ShapeDtypeStruct((B, D, T), x_bdt.dtype),
        grid_spec=pltpu.PrefetchScalarGridSpec(
            num_scalar_prefetch=0,
            grid=grid,
            in_specs=[
                pl.BlockSpec((1, D, tn), lambda b, t: (b, 0, t)),   # x tile
                pl.BlockSpec((H, D), lambda b, t: (0, 0)),          # W1 (resident)
                pl.BlockSpec((H, 1), lambda b, t: (0, 0)),          # b1
                pl.BlockSpec((H, H), lambda b, t: (0, 0)),          # W2 (resident)
                pl.BlockSpec((H, 1), lambda b, t: (0, 0)),          # b2
            ],
            out_specs=pl.BlockSpec((1, D, tn), lambda b, t: (b, 0, t)),
        ),
        compiler_params=cparams,
    )(x_bdt, w1_c, b1_2d, w2_c, b2_2d)


def multilayer_perceptron(x, w1, b1, w2, b2, *, compute_dtype=jnp.bfloat16):
    """Forward pass matching the PyTorch module.

    x  : [B, D, N, W] (NCHW Conv2d input) or [B, D, N]
    w1 : [H, D]  (Conv2d weight [H, D, 1, 1] squeezed),  b1: [H]
    w2 : [H, H],                                         b2: [H]
    returns: same shape/dtype as x.
    """
    orig_shape = x.shape
    if x.ndim == 4:
        B, D, N, W = x.shape
        x_bdt = x.reshape(B, D, N * W)               # free reshape, no transpose
    elif x.ndim == 3:
        x_bdt = x
    else:
        raise ValueError(f"expected 3-D or 4-D input, got shape {orig_shape}")
    y = mlp_channel_major(x_bdt, w1, b1, w2, b2, compute_dtype=compute_dtype)
    return y.reshape(orig_shape)


# ---------------------------------------------------------------------------
# Pure-JAX reference (same bf16-operand / f32-accumulate recipe)
# ---------------------------------------------------------------------------

def _reference(x, w1, b1, w2, b2, compute_dtype=jnp.bfloat16):
    orig_shape = x.shape
    if x.ndim == 4:
        B, D, N, W = x.shape
        xr = x.reshape(B, D, N * W)
    else:
        xr = x
    xf = xr.astype(jnp.float32)
    h = jnp.einsum("hd,bdt->bht", w1.astype(compute_dtype),
                   xf.astype(compute_dtype), preferred_element_type=jnp.float32)
    h = jnp.maximum(h + b1[None, :, None], 0.0)
    y = jnp.einsum("kh,bht->bkt", w2.astype(compute_dtype),
                   h.astype(compute_dtype), preferred_element_type=jnp.float32)
    y = y + b2[None, :, None] + xf
    return y.astype(x.dtype).reshape(orig_shape)


# ---------------------------------------------------------------------------
# Self-test
# ---------------------------------------------------------------------------

if __name__ == "__main__":
    key = jax.random.PRNGKey(0)

    def make_params(k, D, H):
        k_w1, k_b1, k_w2, k_b2 = jax.random.split(k, 4)
        lim1, lim2 = 1.0 / (D ** 0.5), 1.0 / (H ** 0.5)
        w1 = jax.random.uniform(k_w1, (H, D), minval=-lim1, maxval=lim1,
                                dtype=jnp.float32)
        b1 = jax.random.uniform(k_b1, (H,), minval=-lim1, maxval=lim1,
                                dtype=jnp.float32)
        w2 = jax.random.uniform(k_w2, (H, H), minval=-lim2, maxval=lim2,
                                dtype=jnp.float32)
        b2 = jax.random.uniform(k_b2, (H,), minval=-lim2, maxval=lim2,
                                dtype=jnp.float32)
        return w1, b1, w2, b2

    fwd = jax.jit(multilayer_perceptron)

    # ---- Test 1: small NCHW problem (B=2, D=32, N=200, W=1) -> single-step path.
    k1, k2, kx1, kx2 = jax.random.split(key, 4)
    B, D, N, W = 2, 32, 200, 1
    x1 = jax.random.normal(kx1, (B, D, N, W), dtype=jnp.float32)
    p1 = make_params(k1, D, D)
    out1 = jax.block_until_ready(fwd(x1, *p1))
    ref1 = jax.block_until_ready(_reference(x1, *p1))
    assert out1.shape == x1.shape
    err1 = float(jnp.max(jnp.abs(out1 - ref1)))
    assert jnp.allclose(out1, ref1, atol=1e-3, rtol=1e-3), (
        "small-path mismatch, max abs err = %g" % err1)

    # ---- Test 2: larger [B, D, N] problem -> tiled path with a masked partial
    #      edge token tile (T=2500 not a multiple of the chosen tn).
    B2, D2, T2 = 2, 256, 2500
    x2 = jax.random.normal(kx2, (B2, D2, T2), dtype=jnp.float32)
    p2 = make_params(k2, D2, D2)
    out2 = jax.block_until_ready(fwd(x2, *p2))
    ref2 = jax.block_until_ready(_reference(x2, *p2))
    assert out2.shape == x2.shape
    err2 = float(jnp.max(jnp.abs(out2 - ref2)))
    assert jnp.allclose(out2, ref2, atol=2e-3, rtol=2e-3), (
        "tiled-path mismatch, max abs err = %g" % err2)

    print("KERNEL_OK")
</pallas_src>

<mosaic_0001>
module attributes {stable_mosaic.version = 11 : i64} {
  func.func @_mlp_kernel_whole(%arg0: i32, %arg1: memref<2x32x200xf32, #tpu.memory_space<vmem>>, %arg2: memref<32x32xbf16, #tpu.memory_space<vmem>>, %arg3: memref<32x1xf32, #tpu.memory_space<vmem>>, %arg4: memref<32x32xbf16, #tpu.memory_space<vmem>>, %arg5: memref<32x1xf32, #tpu.memory_space<vmem>>, %arg6: memref<2x32x200xf32, #tpu.memory_space<vmem>>) attributes {dimension_semantics = [#tpu.dimension_semantics<arbitrary>], iteration_bounds = array<i64: 1>, scalar_prefetch = 0 : i64, scratch_operands = 0 : i64, tpu.core_type = #tpu.core_type<tc>, window_params = [{pipeline_mode = #tpu.pipeline_mode<synchronous>, transform_indices = @transform_0, window_bounds = array<i64: 2, 32, 200>}, {pipeline_mode = #tpu.pipeline_mode<synchronous>, transform_indices = @transform_1, window_bounds = array<i64: 32, 32>}, {pipeline_mode = #tpu.pipeline_mode<synchronous>, transform_indices = @transform_2, window_bounds = array<i64: 32, 1>}, {pipeline_mode = #tpu.pipeline_mode<synchronous>, transform_indices = @transform_3, window_bounds = array<i64: 32, 32>}, {pipeline_mode = #tpu.pipeline_mode<synchronous>, transform_indices = @transform_4, window_bounds = array<i64: 32, 1>}, {pipeline_mode = #tpu.pipeline_mode<synchronous>, transform_indices = @transform_5, window_bounds = array<i64: 2, 32, 200>}]} {
    %c0 = arith.constant 0 : index
    %c0_0 = arith.constant 0 : index
    %c0_1 = arith.constant 0 : index
    %0 = vector.load %arg1[%c0, %c0_0, %c0_1] : memref<2x32x200xf32, #tpu.memory_space<vmem>>, vector<1x32x200xf32>
    %1 = vector.shape_cast %0 : vector<1x32x200xf32> to vector<32x200xf32>
    %2 = arith.truncf %1 : vector<32x200xf32> to vector<32x200xbf16>
    %c0_2 = arith.constant 0 : index
    %c0_3 = arith.constant 0 : index
    %3 = vector.load %arg2[%c0_2, %c0_3] : memref<32x32xbf16, #tpu.memory_space<vmem>>, vector<32x32xbf16>
    %cst = arith.constant dense<0.000000e+00> : vector<32x200xf32>
    %4 = tpu.matmul %3, %2, %cst {dimension_numbers = #tpu.dot_dimension_numbers<[1], [0], [0], [1], [0, 0, 1, 1], [], []>} : vector<32x32xbf16>, vector<32x200xbf16>, vector<32x200xf32> -> vector<32x200xf32>
    %c0_4 = arith.constant 0 : index
    %c0_5 = arith.constant 0 : index
    %5 = vector.load %arg3[%c0_4, %c0_5] : memref<32x1xf32, #tpu.memory_space<vmem>>, vector<32x1xf32>
    %6 = vector.broadcast %5 : vector<32x1xf32> to vector<32x200xf32>
    %7 = arith.addf %4, %6 : vector<32x200xf32>
    %cst_6 = arith.constant 0.000000e+00 : f32
    %8 = vector.broadcast %cst_6 : f32 to vector<32x200xf32>
    %9 = arith.maximumf %7, %8 : vector<32x200xf32>
    %c0_7 = arith.constant 0 : index
    %c0_8 = arith.constant 0 : index
    %10 = vector.load %arg4[%c0_7, %c0_8] : memref<32x32xbf16, #tpu.memory_space<vmem>>, vector<32x32xbf16>
    %11 = arith.truncf %9 : vector<32x200xf32> to vector<32x200xbf16>
    %cst_9 = arith.constant dense<0.000000e+00> : vector<32x200xf32>
    %12 = tpu.matmul %10, %11, %cst_9 {dimension_numbers = #tpu.dot_dimension_numbers<[1], [0], [0], [1], [0, 0, 1, 1], [], []>} : vector<32x32xbf16>, vector<32x200xbf16>, vector<32x200xf32> -> vector<32x200xf32>
    %c0_10 = arith.constant 0 : index
    %c0_11 = arith.constant 0 : index
    %13 = vector.load %arg5[%c0_10, %c0_11] : memref<32x1xf32, #tpu.memory_space<vmem>>, vector<32x1xf32>
    %14 = vector.broadcast %13 : vector<32x1xf32> to vector<32x200xf32>
    %15 = arith.addf %12, %14 : vector<32x200xf32>
    %16 = arith.addf %15, %1 : vector<32x200xf32>
    %c0_12 = arith.constant 0 : index
    %c0_13 = arith.constant 0 : index
    %c0_14 = arith.constant 0 : index
    %17 = vector.load %arg6[%c0_12, %c0_13, %c0_14] : memref<2x32x200xf32, #tpu.memory_space<vmem>>, vector<1x32x200xf32>
    %18 = vector.shape_cast %17 : vector<1x32x200xf32> to vector<32x200xf32>
    %19 = vector.shape_cast %16 : vector<32x200xf32> to vector<1x32x200xf32>
    tpu.vector_store %arg6[%c0_12, %c0_13, %c0_14], %19 {strides = array<i32>} : memref<2x32x200xf32, #tpu.memory_space<vmem>>, vector<1x32x200xf32>,
    %c1 = arith.constant 1 : index
    %c0_15 = arith.constant 0 : index
    %c0_16 = arith.constant 0 : index
    %20 = vector.load %arg1[%c1, %c0_15, %c0_16] : memref<2x32x200xf32, #tpu.memory_space<vmem>>, vector<1x32x200xf32>
    %21 = vector.shape_cast %20 : vector<1x32x200xf32> to vector<32x200xf32>
    %22 = arith.truncf %21 : vector<32x200xf32> to vector<32x200xbf16>
    %c0_17 = arith.constant 0 : index
    %c0_18 = arith.constant 0 : index
    %23 = vector.load %arg2[%c0_17, %c0_18] : memref<32x32xbf16, #tpu.memory_space<vmem>>, vector<32x32xbf16>
    %cst_19 = arith.constant dense<0.000000e+00> : vector<32x200xf32>
    %24 = tpu.matmul %23, %22, %cst_19 {dimension_numbers = #tpu.dot_dimension_numbers<[1], [0], [0], [1], [0, 0, 1, 1], [], []>} : vector<32x32xbf16>, vector<32x200xbf16>, vector<32x200xf32> -> vector<32x200xf32>
    %c0_20 = arith.constant 0 : index
    %c0_21 = arith.constant 0 : index
    %25 = vector.load %arg3[%c0_20, %c0_21] : memref<32x1xf32, #tpu.memory_space<vmem>>, vector<32x1xf32>
    %26 = vector.broadcast %25 : vector<32x1xf32> to vector<32x200xf32>
    %27 = arith.addf %24, %26 : vector<32x200xf32>
    %cst_22 = arith.constant 0.000000e+00 : f32
    %28 = vector.broadcast %cst_22 : f32 to vector<32x200xf32>
    %29 = arith.maximumf %27, %28 : vector<32x200xf32>
    %c0_23 = arith.constant 0 : index
    %c0_24 = arith.constant 0 : index
    %30 = vector.load %arg4[%c0_23, %c0_24] : memref<32x32xbf16, #tpu.memory_space<vmem>>, vector<32x32xbf16>
    %31 = arith.truncf %29 : vector<32x200xf32> to vector<32x200xbf16>
    %cst_25 = arith.constant dense<0.000000e+00> : vector<32x200xf32>
    %32 = tpu.matmul %30, %31, %cst_25 {dimension_numbers = #tpu.dot_dimension_numbers<[1], [0], [0], [1], [0, 0, 1, 1], [], []>} : vector<32x32xbf16>, vector<32x200xbf16>, vector<32x200xf32> -> vector<32x200xf32>
    %c0_26 = arith.constant 0 : index
    %c0_27 = arith.constant 0 : index
    %33 = vector.load %arg5[%c0_26, %c0_27] : memref<32x1xf32, #tpu.memory_space<vmem>>, vector<32x1xf32>
    %34 = vector.broadcast %33 : vector<32x1xf32> to vector<32x200xf32>
    %35 = arith.addf %32, %34 : vector<32x200xf32>
    %36 = arith.addf %35, %21 : vector<32x200xf32>
    %c1_28 = arith.constant 1 : index
    %c0_29 = arith.constant 0 : index
    %c0_30 = arith.constant 0 : index
    %37 = vector.load %arg6[%c1_28, %c0_29, %c0_30] : memref<2x32x200xf32, #tpu.memory_space<vmem>>, vector<1x32x200xf32>
    %38 = vector.shape_cast %37 : vector<1x32x200xf32> to vector<32x200xf32>
    %39 = vector.shape_cast %36 : vector<32x200xf32> to vector<1x32x200xf32>
    tpu.vector_store %arg6[%c1_28, %c0_29, %c0_30], %39 {strides = array<i32>} : memref<2x32x200xf32, #tpu.memory_space<vmem>>, vector<1x32x200xf32>,
    return
  }
  func.func @transform_0(%arg0: i32) -> (i32, i32, i32) {
    %c0_i32 = arith.constant 0 : i32
    %c0_i32_0 = arith.constant 0 : i32
    %c0_i32_1 = arith.constant 0 : i32
    %c0_i32_2 = arith.constant 0 : i32
    return %c0_i32, %c0_i32_0, %c0_i32_1 : i32, i32, i32
  }
  func.func @transform_1(%arg0: i32) -> (i32, i32) {
    %c0_i32 = arith.constant 0 : i32
    %c0_i32_0 = arith.constant 0 : i32
    %c0_i32_1 = arith.constant 0 : i32
    return %c0_i32, %c0_i32_0 : i32, i32
  }
  func.func @transform_2(%arg0: i32) -> (i32, i32) {
    %c0_i32 = arith.constant 0 : i32
    %c0_i32_0 = arith.constant 0 : i32
    %c0_i32_1 = arith.constant 0 : i32
    return %c0_i32, %c0_i32_0 : i32, i32
  }
  func.func @transform_3(%arg0: i32) -> (i32, i32) {
    %c0_i32 = arith.constant 0 : i32
    %c0_i32_0 = arith.constant 0 : i32
    %c0_i32_1 = arith.constant 0 : i32
    return %c0_i32, %c0_i32_0 : i32, i32
  }
  func.func @transform_4(%arg0: i32) -> (i32, i32) {
    %c0_i32 = arith.constant 0 : i32
    %c0_i32_0 = arith.constant 0 : i32
    %c0_i32_1 = arith.constant 0 : i32
    return %c0_i32, %c0_i32_0 : i32, i32
  }
  func.func @transform_5(%arg0: i32) -> (i32, i32, i32) {
    %c0_i32 = arith.constant 0 : i32
    %c0_i32_0 = arith.constant 0 : i32
    %c0_i32_1 = arith.constant 0 : i32
    %c0_i32_2 = arith.constant 0 : i32
    return %c0_i32, %c0_i32_0, %c0_i32_1 : i32, i32, i32
  }
}

</mosaic_0001>

<llo_original>
// kernel: multilayer_perceptron.1
$region0: #{multilayer_perceptron.1}
  #allocation0 [shape = 'u32[]', space=smem, size = 0x4, offset = 0x4, fixed_abs, tag = 'smem constant byte address 0x4 - core index']
  #allocation1 [shape = 'u32[144,128]{1,0:T(1,128)}', space=vmem, size = 0x12000, scoped, tag = 'internal scratch']
  %s0 = inlined_call_operand.vmem [shape: f32[2,32,200], index: 0, kind: input, shape index: {}]
  %s1 = inlined_call_operand.vmem [shape: bf16[32,32], index: 1, kind: input, shape index: {}]
  %s2 = inlined_call_operand.vmem [shape: f32[32,1], index: 2, kind: input, shape index: {}]
  %s3 = inlined_call_operand.vmem [shape: bf16[32,32], index: 3, kind: input, shape index: {}]
  %s4 = inlined_call_operand.vmem [shape: f32[32,1], index: 4, kind: input, shape index: {}]
  %s5 = inlined_call_operand.vmem [shape: f32[2,32,200], index: 5, kind: output, shape index: {}]
  %s6 = sld [smem:[#allocation0]]
  $region30: #{multilayer_perceptron.1} parent=0
    _
  %s8 = ssub.s32 1, %s6
  %s9 = scalar_select 0, %s8, %s6
  // Predicated region
  $region2: #{multilayer_perceptron.1} parent=0 // pred_check
    _
  $region3: #{multilayer_perceptron.1} parent=0 // pred_check_branch
    %11 = sbr.rel (0) target = $region5
  $region4: #{multilayer_perceptron.1} parent=0 // pred_region
    _
  $region5: #{multilayer_perceptron.1} parent=0 // pred_fallthru
    _
  // Predicated region
  $region6: #{multilayer_perceptron.1} parent=0 // pred_check
    _
  $region7: #{multilayer_perceptron.1} parent=0 // pred_check_branch
    %13 = sbr.rel (0) target = $region9
  $region8: #{multilayer_perceptron.1} parent=0 // pred_region
    _
  $region9: #{multilayer_perceptron.1} parent=0 // pred_fallthru
    _
  // Predicated region
  $region10: #{multilayer_perceptron.1} parent=0 // pred_check
    _
  $region11: #{multilayer_perceptron.1} parent=0 // pred_check_branch
    %15 = sbr.rel (0) target = $region13
  $region12: #{multilayer_perceptron.1} parent=0 // pred_region
    _
  $region13: #{multilayer_perceptron.1} parent=0 // pred_fallthru
    _
  // Predicated region
  $region14: #{multilayer_perceptron.1} parent=0 // pred_check
    _
  $region15: #{multilayer_perceptron.1} parent=0 // pred_check_branch
    %17 = sbr.rel (0) target = $region17
  $region16: #{multilayer_perceptron.1} parent=0 // pred_region
    _
  $region17: #{multilayer_perceptron.1} parent=0 // pred_fallthru
    _
  // Predicated region
  $region18: #{multilayer_perceptron.1} parent=0 // pred_check
    _
  $region19: #{multilayer_perceptron.1} parent=0 // pred_check_branch
    %19 = sbr.rel (0) target = $region21
  $region20: #{multilayer_perceptron.1} parent=0 // pred_region
    _
  $region21: #{multilayer_perceptron.1} parent=0 // pred_fallthru
    _
  %v21 = vld [vmem:[%s0] sm:$0xff]
  %v22 = vld [vmem:[%s0 + $0x8] sm:$0xff]
  %v23 = vld [vmem:[%s0 + $0x10] sm:$0xff]
  %v24 = vld [vmem:[%s0 + $0x18] sm:$0xff]
  %v25 = vld [vmem:[%s0 + $0x20] sm:$0xff]
  %v26 = vld [vmem:[%s0 + $0x28] sm:$0xff]
  %v27 = vld [vmem:[%s0 + $0x30] sm:$0xff]
  %v28 = vld [vmem:[%s0 + $0x38] sm:$0xff]
  %v29 = vpack.c.bf16 %v23, %v21
  %v30 = vpack.c.bf16 %v24, %v22
  %v31 = vpack.c.bf16 %v27, %v25
  %v32 = vpack.c.bf16 %v28, %v26
  %v33 = vld [vmem:[%s1] sm:$0xf]
  %v34 = vld [vmem:[%s1 + $0x4] sm:$0xf]
  %v35 = vld [vmem:[%s1 + $0x8] sm:$0xf]
  %v36 = vld [vmem:[%s1 + $0xc] sm:$0xf]
  %v37 = vld [vmem:[%s2] sm:$0xff]
  %v38 = vld [vmem:[%s2 + $0x8] sm:$0xff]
  %v39 = vld [vmem:[%s2 + $0x10] sm:$0xff]
  %v40 = vld [vmem:[%s2 + $0x18] sm:$0xff]
  %42 = vset.pattern.permute.xlu0 0
  %43 = vperm.xlu0 %42, %v37
  %v44 = vpop.permute.xlu0 %43
  %47 = vset.pattern.permute.xlu0 0
  %48 = vperm.xlu0 %47, %v38
  %v49 = vpop.permute.xlu0 %48
  %52 = vset.pattern.permute.xlu0 0
  %53 = vperm.xlu0 %52, %v39
  %v54 = vpop.permute.xlu0 %53
  %57 = vset.pattern.permute.xlu0 0
  %58 = vperm.xlu0 %57, %v40
  %v59 = vpop.permute.xlu0 %58
  %v65 = vunpack.c.l.b16 %v33
  %v66 = vunpack.c.l.b16 %v34
  %v67 = vunpack.c.l.b16 %v35
  %v68 = vunpack.c.l.b16 %v36
  %v69 = vpack.c.b16 %v66, %v65
  %v70 = vpack.c.b16 %v68, %v67
  %vm71 = vcmask 261120
  %v73 = vsel %vm71, %v69, 0
  %v76 = vsel %vm71, %v70, 0
  %78 = vmatprep.subr.bf16.mxu0 %v30
  %79 = vmatpush1.bf16.msra.mxu0 %v29
  %80 = vmatprep.subr.bf16.mxu0 %v32
  %81 = vmatpush1.bf16.msra.mxu0 %v31
  %82 = vmatprep.subr.bf16.mxu0 0
  %83 = vmatpush1.bf16.msra.mxu0 0
  %84 = vmatprep.subr.bf16.mxu0 0
  %85 = vmatpush1.bf16.msra.mxu0 0
  %86 = vmatprep.subr.bf16.mxu0 0
  %87 = vmatpush1.bf16.msra.mxu0 0
  %88 = vmatprep.subr.bf16.mxu0 0
  %89 = vmatpush1.bf16.msra.mxu0 0
  %90 = vmatprep.subr.bf16.mxu0 0
  %91 = vmatpush1.bf16.msra.mxu0 0
  %92 = vmatprep.subr.bf16.mxu0 0
  %93 = vmatpush1.bf16.msra.mxu0 0
  %94 = vmatprep.subr.bf16.mxu0 0
  %95 = vmatpush1.bf16.msra.mxu0 0
  %96 = vmatprep.subr.bf16.mxu0 0
  %97 = vmatpush1.bf16.msra.mxu0 0
  %98 = vmatprep.subr.bf16.mxu0 0
  %99 = vmatpush1.bf16.msra.mxu0 0
  %100 = vmatprep.subr.bf16.mxu0 0
  %101 = vmatpush1.bf16.msra.mxu0 0
  %102 = vmatprep.subr.bf16.mxu0 0
  %103 = vmatpush1.bf16.msra.mxu0 0
  %104 = vmatprep.subr.bf16.mxu0 0
  %105 = vmatpush1.bf16.msra.mxu0 0
  %106 = vmatprep.subr.bf16.mxu0 0
  %107 = vmatpush1.bf16.msra.mxu0 0
  %108 = vmatprep.subr.bf16.mxu0 0
  %109 = vmatpush1.bf16.msra.mxu0 0
  %110 = vmatprep.mubr.bf16.mxu0 0
  %111 = vmatmul.mubr.bf16.gmra.mrb[0].mxu0 %v73
  %v112 = vpop.f32.mrb[0].mxu0
  %v113 = vadd.f32 %v44, %v112
  %v114 = vpop.f32.mrb[0].mxu0
  %v115 = vadd.f32 %v44, %v114
  %v116 = vpop.f32.mrb[0].mxu0
  %v117 = vadd.f32 %v49, %v116
  %v118 = vpop.f32.mrb[0].mxu0
  %v119 = vadd.f32 %v49, %v118
  %120 = vmatprep.mubr.bf16.mxu0 0
  %121 = vmatmul.mubr.bf16.gmra.mrb[0].mxu0 %v76
  %v122 = vpop.f32.mrb[0].mxu0
  %v123 = vadd.f32 %v54, %v122
  %v124 = vpop.f32.mrb[0].mxu0
  %v125 = vadd.f32 %v54, %v124
  %v126 = vpop.f32.mrb[0].mxu0
  %v127 = vadd.f32 %v59, %v126
  %v128 = vpop.f32.mrb[0].mxu0
  %v129 = vadd.f32 %v59, %v128
  %130 = vdwg.mxu0
  %v131 = vmax.f32 %v113, 0.0
  %v132 = vmax.f32 %v115, 0.0
  %v133 = vmax.f32 %v117, 0.0
  %v134 = vmax.f32 %v119, 0.0
  %v135 = vmax.f32 %v123, 0.0
  %v136 = vmax.f32 %v125, 0.0
  %v137 = vmax.f32 %v127, 0.0
  %v138 = vmax.f32 %v129, 0.0
  %v139 = vld [vmem:[%s3] sm:$0xf]
  %v140 = vld [vmem:[%s3 + $0x4] sm:$0xf]
  %v141 = vld [vmem:[%s3 + $0x8] sm:$0xf]
  %v142 = vld [vmem:[%s3 + $0xc] sm:$0xf]
  %v143 = vpack.c.bf16 %v133, %v131
  %v144 = vpack.c.bf16 %v134, %v132
  %v145 = vpack.c.bf16 %v137, %v135
  %v146 = vpack.c.bf16 %v138, %v136
  %v147 = vld [vmem:[%s4] sm:$0xff]
  %v148 = vld [vmem:[%s4 + $0x8] sm:$0xff]
  %v149 = vld [vmem:[%s4 + $0x10] sm:$0xff]
  %v150 = vld [vmem:[%s4 + $0x18] sm:$0xff]
  %152 = vset.pattern.permute.xlu0 0
  %153 = vperm.xlu0 %152, %v147
  %v154 = vpop.permute.xlu0 %153
  %157 = vset.pattern.permute.xlu0 0
  %158 = vperm.xlu0 %157, %v148
  %v159 = vpop.permute.xlu0 %158
  %162 = vset.pattern.permute.xlu0 0
  %163 = vperm.xlu0 %162, %v149
  %v164 = vpop.permute.xlu0 %163
  %167 = vset.pattern.permute.xlu0 0
  %168 = vperm.xlu0 %167, %v150
  %v169 = vpop.permute.xlu0 %168
  %v175 = vunpack.c.l.b16 %v139
  %v176 = vunpack.c.l.b16 %v140
  %v177 = vunpack.c.l.b16 %v141
  %v178 = vunpack.c.l.b16 %v142
  %v179 = vpack.c.b16 %v176, %v175
  %v180 = vpack.c.b16 %v178, %v177
  %v182 = vsel %vm71, %v179, 0
  %v185 = vsel %vm71, %v180, 0
  %187 = vmatprep.subr.bf16.mxu0 %v144
  %188 = vmatpush1.bf16.msra.mxu0 %v143
  %189 = vmatprep.subr.bf16.mxu0 %v146
  %190 = vmatpush1.bf16.msra.mxu0 %v145
  %191 = vmatprep.subr.bf16.mxu0 0
  %192 = vmatpush1.bf16.msra.mxu0 0
  %193 = vmatprep.subr.bf16.mxu0 0
  %194 = vmatpush1.bf16.msra.mxu0 0
  %195 = vmatprep.subr.bf16.mxu0 0
  %196 = vmatpush1.bf16.msra.mxu0 0
  %197 = vmatprep.subr.bf16.mxu0 0
  %198 = vmatpush1.bf16.msra.mxu0 0
  %199 = vmatprep.subr.bf16.mxu0 0
  %200 = vmatpush1.bf16.msra.mxu0 0
  %201 = vmatprep.subr.bf16.mxu0 0
  %202 = vmatpush1.bf16.msra.mxu0 0
  %203 = vmatprep.subr.bf16.mxu0 0
  %204 = vmatpush1.bf16.msra.mxu0 0
  %205 = vmatprep.subr.bf16.mxu0 0
  %206 = vmatpush1.bf16.msra.mxu0 0
  %207 = vmatprep.subr.bf16.mxu0 0
  %208 = vmatpush1.bf16.msra.mxu0 0
  %209 = vmatprep.subr.bf16.mxu0 0
  %210 = vmatpush1.bf16.msra.mxu0 0
  %211 = vmatprep.subr.bf16.mxu0 0
  %212 = vmatpush1.bf16.msra.mxu0 0
  %213 = vmatprep.subr.bf16.mxu0 0
  %214 = vmatpush1.bf16.msra.mxu0 0
  %215 = vmatprep.subr.bf16.mxu0 0
  %216 = vmatpush1.bf16.msra.mxu0 0
  %217 = vmatprep.subr.bf16.mxu0 0
  %218 = vmatpush1.bf16.msra.mxu0 0
  %219 = vmatprep.mubr.bf16.mxu0 0
  %220 = vmatmul.mubr.bf16.gmra.mrb[0].mxu0 %v182
  %v221 = vpop.f32.mrb[0].mxu0
  %v222 = vadd.f32 %v154, %v221
  %v223 = vpop.f32.mrb[0].mxu0
  %v224 = vadd.f32 %v154, %v223
  %v225 = vpop.f32.mrb[0].mxu0
  %v226 = vadd.f32 %v159, %v225
  %v227 = vpop.f32.mrb[0].mxu0
  %v228 = vadd.f32 %v159, %v227
  %229 = vmatprep.mubr.bf16.mxu0 0
  %230 = vmatmul.mubr.bf16.gmra.mrb[0].mxu0 %v185
  %v231 = vpop.f32.mrb[0].mxu0
  %v232 = vadd.f32 %v164, %v231
  %v233 = vpop.f32.mrb[0].mxu0
  %v234 = vadd.f32 %v164, %v233
  %v235 = vpop.f32.mrb[0].mxu0
  %v236 = vadd.f32 %v169, %v235
  %v237 = vpop.f32.mrb[0].mxu0
  %v238 = vadd.f32 %v169, %v237
  %239 = vdwg.mxu0
  %v240 = vadd.f32 %v222, %v21
  %v241 = vadd.f32 %v224, %v22
  %v242 = vadd.f32 %v226, %v23
  %v243 = vadd.f32 %v228, %v24
  %v244 = vadd.f32 %v232, %v25
  %v245 = vadd.f32 %v234, %v26
  %v246 = vadd.f32 %v236, %v27
  %v247 = vadd.f32 %v238, %v28
  %248 = vst [vmem:[%s5] sm:$0xff] %v240
  %vm249 = vcmask 588800
  %250 = vst.msk [vmem:[%s5 + $0x8] sm:$0xff] %vm249, %v241
  %251 = vst [vmem:[%s5 + $0x10] sm:$0xff] %v242
  %252 = vst.msk [vmem:[%s5 + $0x18] sm:$0xff] %vm249, %v243
  %253 = vst [vmem:[%s5 + $0x20] sm:$0xff] %v244
  %254 = vst.msk [vmem:[%s5 + $0x28] sm:$0xff] %vm249, %v245
  %255 = vst [vmem:[%s5 + $0x30] sm:$0xff] %v246
  %256 = vst.msk [vmem:[%s5 + $0x38] sm:$0xff] %vm249, %v247
  %s257 = scalar_lea.vmem %s0, 64
  %v258 = vld [vmem:[%s257] sm:$0xff]
  %v259 = vld [vmem:[%s257 + $0x8] sm:$0xff]
  %v260 = vld [vmem:[%s257 + $0x10] sm:$0xff]
  %v261 = vld [vmem:[%s257 + $0x18] sm:$0xff]
  %v262 = vld [vmem:[%s257 + $0x20] sm:$0xff]
  %v263 = vld [vmem:[%s257 + $0x28] sm:$0xff]
  %v264 = vld [vmem:[%s257 + $0x30] sm:$0xff]
  %v265 = vld [vmem:[%s257 + $0x38] sm:$0xff]
  %v266 = vpack.c.bf16 %v260, %v258
  %v267 = vpack.c.bf16 %v261, %v259
  %v268 = vpack.c.bf16 %v264, %v262
  %v269 = vpack.c.bf16 %v265, %v263
  %v270 = vld [vmem:[%s1] sm:$0xf]
  %v271 = vld [vmem:[%s1 + $0x4] sm:$0xf]
  %v272 = vld [vmem:[%s1 + $0x8] sm:$0xf]
  %v273 = vld [vmem:[%s1 + $0xc] sm:$0xf]
  %v274 = vld [vmem:[%s2] sm:$0xff]
  %v275 = vld [vmem:[%s2 + $0x8] sm:$0xff]
  %v276 = vld [vmem:[%s2 + $0x10] sm:$0xff]
  %v277 = vld [vmem:[%s2 + $0x18] sm:$0xff]
  %279 = vset.pattern.permute.xlu0 0
  %280 = vperm.xlu0 %279, %v274
  %v281 = vpop.permute.xlu0 %280
  %284 = vset.pattern.permute.xlu0 0
  %285 = vperm.xlu0 %284, %v275
  %v286 = vpop.permute.xlu0 %285
  %289 = vset.pattern.permute.xlu0 0
  %290 = vperm.xlu0 %289, %v276
  %v291 = vpop.permute.xlu0 %290
  %294 = vset.pattern.permute.xlu0 0
  %295 = vperm.xlu0 %294, %v277
  %v296 = vpop.permute.xlu0 %295
  %v302 = vunpack.c.l.b16 %v270
  %v303 = vunpack.c.l.b16 %v271
  %v304 = vunpack.c.l.b16 %v272
  %v305 = vunpack.c.l.b16 %v273
  %v306 = vpack.c.b16 %v303, %v302
  %v307 = vpack.c.b16 %v305, %v304
  %v309 = vsel %vm71, %v306, 0
  %v312 = vsel %vm71, %v307, 0
  %314 = vmatprep.subr.bf16.mxu0 %v267
  %315 = vmatpush1.bf16.msra.mxu0 %v266
  %316 = vmatprep.subr.bf16.mxu0 %v269
  %317 = vmatpush1.bf16.msra.mxu0 %v268
  %318 = vmatprep.subr.bf16.mxu0 0
  %319 = vmatpush1.bf16.msra.mxu0 0
  %320 = vmatprep.subr.bf16.mxu0 0
  %321 = vmatpush1.bf16.msra.mxu0 0
  %322 = vmatprep.subr.bf16.mxu0 0
  %323 = vmatpush1.bf16.msra.mxu0 0
  %324 = vmatprep.subr.bf16.mxu0 0
  %325 = vmatpush1.bf16.msra.mxu0 0
  %326 = vmatprep.subr.bf16.mxu0 0
  %327 = vmatpush1.bf16.msra.mxu0 0
  %328 = vmatprep.subr.bf16.mxu0 0
  %329 = vmatpush1.bf16.msra.mxu0 0
  %330 = vmatprep.subr.bf16.mxu0 0
  %331 = vmatpush1.bf16.msra.mxu0 0
  %332 = vmatprep.subr.bf16.mxu0 0
  %333 = vmatpush1.bf16.msra.mxu0 0
  %334 = vmatprep.subr.bf16.mxu0 0
  %335 = vmatpush1.bf16.msra.mxu0 0
  %336 = vmatprep.subr.bf16.mxu0 0
  %337 = vmatpush1.bf16.msra.mxu0 0
  %338 = vmatprep.subr.bf16.mxu0 0
  %339 = vmatpush1.bf16.msra.mxu0 0
  %340 = vmatprep.subr.bf16.mxu0 0
  %341 = vmatpush1.bf16.msra.mxu0 0
  %342 = vmatprep.subr.bf16.mxu0 0
  %343 = vmatpush1.bf16.msra.mxu0 0
  %344 = vmatprep.subr.bf16.mxu0 0
  %345 = vmatpush1.bf16.msra.mxu0 0
  %346 = vmatprep.mubr.bf16.mxu0 0
  %347 = vmatmul.mubr.bf16.gmra.mrb[0].mxu0 %v309
  %v348 = vpop.f32.mrb[0].mxu0
  %v349 = vadd.f32 %v281, %v348
  %v350 = vpop.f32.mrb[0].mxu0
  %v351 = vadd.f32 %v281, %v350
  %v352 = vpop.f32.mrb[0].mxu0
  %v353 = vadd.f32 %v286, %v352
  %v354 = vpop.f32.mrb[0].mxu0
  %v355 = vadd.f32 %v286, %v354
  %356 = vmatprep.mubr.bf16.mxu0 0
  %357 = vmatmul.mubr.bf16.gmra.mrb[0].mxu0 %v312
  %v358 = vpop.f32.mrb[0].mxu0
  %v359 = vadd.f32 %v291, %v358
  %v360 = vpop.f32.mrb[0].mxu0
  %v361 = vadd.f32 %v291, %v360
  %v362 = vpop.f32.mrb[0].mxu0
  %v363 = vadd.f32 %v296, %v362
  %v364 = vpop.f32.mrb[0].mxu0
  %v365 = vadd.f32 %v296, %v364
  %366 = vdwg.mxu0
  %v367 = vmax.f32 %v349, 0.0
  %v368 = vmax.f32 %v351, 0.0
  %v369 = vmax.f32 %v353, 0.0
  %v370 = vmax.f32 %v355, 0.0
  %v371 = vmax.f32 %v359, 0.0
  %v372 = vmax.f32 %v361, 0.0
  %v373 = vmax.f32 %v363, 0.0
  %v374 = vmax.f32 %v365, 0.0
  %v375 = vld [vmem:[%s3] sm:$0xf]
  %v376 = vld [vmem:[%s3 + $0x4] sm:$0xf]
  %v377 = vld [vmem:[%s3 + $0x8] sm:$0xf]
  %v378 = vld [vmem:[%s3 + $0xc] sm:$0xf]
  %v379 = vpack.c.bf16 %v369, %v367
  %v380 = vpack.c.bf16 %v370, %v368
  %v381 = vpack.c.bf16 %v373, %v371
  %v382 = vpack.c.bf16 %v374, %v372
  %v383 = vld [vmem:[%s4] sm:$0xff]
  %v384 = vld [vmem:[%s4 + $0x8] sm:$0xff]
  %v385 = vld [vmem:[%s4 + $0x10] sm:$0xff]
  %v386 = vld [vmem:[%s4 + $0x18] sm:$0xff]
  %388 = vset.pattern.permute.xlu0 0
  %389 = vperm.xlu0 %388, %v383
  %v390 = vpop.permute.xlu0 %389
  %393 = vset.pattern.permute.xlu0 0
  %394 = vperm.xlu0 %393, %v384
  %v395 = vpop.permute.xlu0 %394
  %398 = vset.pattern.permute.xlu0 0
  %399 = vperm.xlu0 %398, %v385
  %v400 = vpop.permute.xlu0 %399
  %403 = vset.pattern.permute.xlu0 0
  %404 = vperm.xlu0 %403, %v386
  %v405 = vpop.permute.xlu0 %404
  %v411 = vunpack.c.l.b16 %v375
  %v412 = vunpack.c.l.b16 %v376
  %v413 = vunpack.c.l.b16 %v377
  %v414 = vunpack.c.l.b16 %v378
  %v415 = vpack.c.b16 %v412, %v411
  %v416 = vpack.c.b16 %v414, %v413
  %v418 = vsel %vm71, %v415, 0
  %v421 = vsel %vm71, %v416, 0
  %423 = vmatprep.subr.bf16.mxu0 %v380
  %424 = vmatpush1.bf16.msra.mxu0 %v379
  %425 = vmatprep.subr.bf16.mxu0 %v382
  %426 = vmatpush1.bf16.msra.mxu0 %v381
  %427 = vmatprep.subr.bf16.mxu0 0
  %428 = vmatpush1.bf16.msra.mxu0 0
  %429 = vmatprep.subr.bf16.mxu0 0
  %430 = vmatpush1.bf16.msra.mxu0 0
  %431 = vmatprep.subr.bf16.mxu0 0
  %432 = vmatpush1.bf16.msra.mxu0 0
  %433 = vmatprep.subr.bf16.mxu0 0
  %434 = vmatpush1.bf16.msra.mxu0 0
  %435 = vmatprep.subr.bf16.mxu0 0
  %436 = vmatpush1.bf16.msra.mxu0 0
  %437 = vmatprep.subr.bf16.mxu0 0
  %438 = vmatpush1.bf16.msra.mxu0 0
  %439 = vmatprep.subr.bf16.mxu0 0
  %440 = vmatpush1.bf16.msra.mxu0 0
  %441 = vmatprep.subr.bf16.mxu0 0
  %442 = vmatpush1.bf16.msra.mxu0 0
  %443 = vmatprep.subr.bf16.mxu0 0
  %444 = vmatpush1.bf16.msra.mxu0 0
  %445 = vmatprep.subr.bf16.mxu0 0
  %446 = vmatpush1.bf16.msra.mxu0 0
  %447 = vmatprep.subr.bf16.mxu0 0
  %448 = vmatpush1.bf16.msra.mxu0 0
  %449 = vmatprep.subr.bf16.mxu0 0
  %450 = vmatpush1.bf16.msra.mxu0 0
  %451 = vmatprep.subr.bf16.mxu0 0
  %452 = vmatpush1.bf16.msra.mxu0 0
  %453 = vmatprep.subr.bf16.mxu0 0
  %454 = vmatpush1.bf16.msra.mxu0 0
  %455 = vmatprep.mubr.bf16.mxu0 0
  %456 = vmatmul.mubr.bf16.gmra.mrb[0].mxu0 %v418
  %v457 = vpop.f32.mrb[0].mxu0
  %v458 = vadd.f32 %v390, %v457
  %v459 = vpop.f32.mrb[0].mxu0
  %v460 = vadd.f32 %v390, %v459
  %v461 = vpop.f32.mrb[0].mxu0
  %v462 = vadd.f32 %v395, %v461
  %v463 = vpop.f32.mrb[0].mxu0
  %v464 = vadd.f32 %v395, %v463
  %465 = vmatprep.mubr.bf16.mxu0 0
  %466 = vmatmul.mubr.bf16.gmra.mrb[0].mxu0 %v421
  %v467 = vpop.f32.mrb[0].mxu0
  %v468 = vadd.f32 %v400, %v467
  %v469 = vpop.f32.mrb[0].mxu0
  %v470 = vadd.f32 %v400, %v469
  %v471 = vpop.f32.mrb[0].mxu0
  %v472 = vadd.f32 %v405, %v471
  %v473 = vpop.f32.mrb[0].mxu0
  %v474 = vadd.f32 %v405, %v473
  %475 = vdwg.mxu0
  %v476 = vadd.f32 %v458, %v258
  %v477 = vadd.f32 %v460, %v259
  %v478 = vadd.f32 %v462, %v260
  %v479 = vadd.f32 %v464, %v261
  %v480 = vadd.f32 %v468, %v262
  %v481 = vadd.f32 %v470, %v263
  %v482 = vadd.f32 %v472, %v264
  %v483 = vadd.f32 %v474, %v265
  %s484 = scalar_lea.vmem %s5, 64
  %485 = vst [vmem:[%s484] sm:$0xff] %v476
  %486 = vst.msk [vmem:[%s484 + $0x8] sm:$0xff] %vm249, %v477
  %487 = vst [vmem:[%s484 + $0x10] sm:$0xff] %v478
  %488 = vst.msk [vmem:[%s484 + $0x18] sm:$0xff] %vm249, %v479
  %489 = vst [vmem:[%s484 + $0x20] sm:$0xff] %v480
  %490 = vst.msk [vmem:[%s484 + $0x28] sm:$0xff] %vm249, %v481
  %491 = vst [vmem:[%s484 + $0x30] sm:$0xff] %v482
  %492 = vst.msk [vmem:[%s484 + $0x38] sm:$0xff] %vm249, %v483
  // Predicated region
  $region22: #{multilayer_perceptron.1} parent=0 // pred_check
    _
  $region23: #{multilayer_perceptron.1} parent=0 // pred_check_branch
    %494 = sbr.rel (0) target = $region25
  $region24: #{multilayer_perceptron.1} parent=0 // pred_region
    _
  $region25: #{multilayer_perceptron.1} parent=0 // pred_fallthru
    _
  // Predicated region
  $region26: #{multilayer_perceptron.1} parent=0 // pred_check
    _
  $region27: #{multilayer_perceptron.1} parent=0 // pred_check_branch
    %496 = sbr.rel (0) target = $region29
  $region28: #{multilayer_perceptron.1} parent=0 // pred_region
    _
  $region29: #{multilayer_perceptron.1} parent=0 // pred_fallthru
    _

</llo_original>
